<compile_context>
chip_gen: v5e
topology: v5e:2x2
jax: 0.10.0
libtpu: 0.0.40
codegen_flags: <defaults>
</compile_context>

<pallas_src>
import math

import jax
import jax.numpy as jnp
from jax.experimental import pallas as pl
from jax.experimental.pallas import tpu as pltpu

_LANES = 512        # lane-dense last dim (multiple of 128)
_BLOCK_ROWS = 1024  # (1024, 512) f32 = 2 MiB per tile


def _fmod_kernel(x_ref, y_ref, o_ref):
    # torch.fmod semantics: C-style (truncated-division) remainder, result
    # takes the sign of the dividend. jnp.fmod implements exactly this.
    o_ref[...] = jnp.fmod(x_ref[...], y_ref[...])


def pallas_fmod(x, y):
    assert x.shape == y.shape, "broadcasting not needed for this test module"
    assert x.dtype == y.dtype
    orig_shape = x.shape
    total = math.prod(orig_shape)

    xf = x.reshape(-1)
    yf = y.reshape(-1)

    # Rows of a lane-dense 2D view.
    rows = -(-total // _LANES)

    if rows <= _BLOCK_ROWS:
        # Single block equal to the full (padded) array — no grid needed.
        block_rows = max(rows, 1)
        padded_rows = block_rows
    else:
        # Tiled path: pad rows to a multiple of the block height.
        block_rows = _BLOCK_ROWS
        padded_rows = -(-rows // block_rows) * block_rows

    pad_amt = padded_rows * _LANES - total
    if pad_amt:
        xf = jnp.pad(xf, (0, pad_amt))
        # Pad divisor with 1.0 so padded lanes never hit fmod(x, 0).
        yf = jnp.pad(yf, (0, pad_amt), constant_values=1)

    x2 = xf.reshape(padded_rows, _LANES)
    y2 = yf.reshape(padded_rows, _LANES)
    grid = (padded_rows // block_rows,)

    nbytes = padded_rows * _LANES * x.dtype.itemsize
    out2 = pl.pallas_call(
        _fmod_kernel,
        out_shape=jax.ShapeDtypeStruct((padded_rows, _LANES), x.dtype),
        grid=grid,
        in_specs=[
            pl.BlockSpec((block_rows, _LANES), lambda i: (i, 0)),
            pl.BlockSpec((block_rows, _LANES), lambda i: (i, 0)),
        ],
        out_specs=pl.BlockSpec((block_rows, _LANES), lambda i: (i, 0)),
        compiler_params=pltpu.CompilerParams(
            dimension_semantics=("parallel",),
        ),
        cost_estimate=pl.CostEstimate(
            flops=3 * padded_rows * _LANES,          # div + trunc + fused mul-sub
            transcendentals=padded_rows * _LANES,    # reciprocal on EUP
            bytes_accessed=3 * nbytes,
        ),
    )(x2, y2)

    return out2.reshape(-1)[:total].reshape(orig_shape)


if __name__ == "__main__":
    key = jax.random.PRNGKey(0)

    # --- primary test: module-sized input (single-block, lane-dense path) ---
    kx, ky = jax.random.split(key)
    shape = (2, 4, 16, 16)
    x = jax.random.normal(kx, shape, dtype=jnp.float32) * 5.0
    y = jax.random.normal(ky, shape, dtype=jnp.float32) * 2.0
    # Keep divisors away from zero.
    y = jnp.where(jnp.abs(y) < 0.1, jnp.sign(y) * 0.1 + (y == 0) * 0.1, y)

    out = pallas_fmod(x, y)
    jax.block_until_ready(out)
    ref = jnp.fmod(x, y)
    assert jnp.allclose(out, ref, atol=1e-6, rtol=1e-6), "mismatch vs reference (small)"

    # --- secondary test: exercises the tiled multi-block grid path ---
    kx2, ky2 = jax.random.split(ky)
    shape2 = (4, 4, 256, 256)  # 1,048,576 elems -> 2048 rows -> grid=(2,)
    x2 = jax.random.normal(kx2, shape2, dtype=jnp.float32) * 5.0
    y2 = jax.random.normal(ky2, shape2, dtype=jnp.float32) * 2.0
    y2 = jnp.where(jnp.abs(y2) < 0.1, jnp.sign(y2) * 0.1 + (y2 == 0) * 0.1, y2)

    out2 = pallas_fmod(x2, y2)
    jax.block_until_ready(out2)
    ref2 = jnp.fmod(x2, y2)
    assert jnp.allclose(out2, ref2, atol=1e-6, rtol=1e-6), "mismatch vs reference (tiled)"

    print("KERNEL_OK")
</pallas_src>

<mosaic_0001>
module attributes {stable_mosaic.version = 11 : i64} {
  func.func @_fmod_kernel(%arg0: i32, %arg1: memref<4x512xf32, #tpu.memory_space<vmem>>, %arg2: memref<4x512xf32, #tpu.memory_space<vmem>>, %arg3: memref<4x512xf32, #tpu.memory_space<vmem>>) attributes {dimension_semantics = [#tpu.dimension_semantics<parallel>], iteration_bounds = array<i64: 1>, scalar_prefetch = 0 : i64, scratch_operands = 0 : i64, tpu.core_type = #tpu.core_type<tc>, window_params = [{transform_indices = @transform_0, window_bounds = array<i64: 4, 512>}, {transform_indices = @transform_1, window_bounds = array<i64: 4, 512>}, {transform_indices = @transform_2, window_bounds = array<i64: 4, 512>}]} {
    %c0 = arith.constant 0 : index
    %c0_0 = arith.constant 0 : index
    %0 = vector.load %arg1[%c0, %c0_0] : memref<4x512xf32, #tpu.memory_space<vmem>>, vector<4x512xf32>
    %c0_1 = arith.constant 0 : index
    %c0_2 = arith.constant 0 : index
    %1 = vector.load %arg2[%c0_1, %c0_2] : memref<4x512xf32, #tpu.memory_space<vmem>>, vector<4x512xf32>
    %2 = arith.remf %0, %1 : vector<4x512xf32>
    %c0_3 = arith.constant 0 : index
    %c0_4 = arith.constant 0 : index
    %3 = vector.load %arg3[%c0_3, %c0_4] : memref<4x512xf32, #tpu.memory_space<vmem>>, vector<4x512xf32>
    tpu.vector_store %arg3[%c0_3, %c0_4], %2 {strides = array<i32>} : memref<4x512xf32, #tpu.memory_space<vmem>>, vector<4x512xf32>,
    return
  }
  func.func @transform_0(%arg0: i32) -> (i32, i32) {
    %c0_i32 = arith.constant 0 : i32
    %c0_i32_0 = arith.constant 0 : i32
    return %arg0, %c0_i32 : i32, i32
  }
  func.func @transform_1(%arg0: i32) -> (i32, i32) {
    %c0_i32 = arith.constant 0 : i32
    %c0_i32_0 = arith.constant 0 : i32
    return %arg0, %c0_i32 : i32, i32
  }
  func.func @transform_2(%arg0: i32) -> (i32, i32) {
    %c0_i32 = arith.constant 0 : i32
    %c0_i32_0 = arith.constant 0 : i32
    return %arg0, %c0_i32 : i32, i32
  }
}

</mosaic_0001>

<llo_original>
// kernel: tpu_custom_call.1
$region0: #{tpu_custom_call.1}
  #allocation0 [shape = 'u32[]', space=smem, size = 0x4, offset = 0x4, fixed_abs, tag = 'smem constant byte address 0x4 - core index']
  #allocation1 [shape = 'u32[72,128]{1,0:T(1,128)}', space=vmem, size = 0x9000, scoped, tag = 'internal scratch']
  %s0 = inlined_call_operand.hbm [shape: f32[4,512], index: 0, kind: input, shape index: {}]
  %s1 = inlined_call_operand.hbm [shape: f32[4,512], index: 1, kind: input, shape index: {}]
  %s2 = inlined_call_operand.hbm [shape: f32[4,512], index: 2, kind: output, shape index: {}]
  %s3 = sld [smem:[#allocation0]]
  $region26: #{tpu_custom_call.1} parent=0
    _
  %s5 = ssub.s32 1, %s3
  %s6 = scalar_select 0, %s5, %s3
  $region1: #{tpu_custom_call.1} parent=0
    #allocation2 [shape = 'u8[8192]{0}', space=vmem, size = 0x2000, scoped, tag = 'input window, operand 0, single buffered']
    #allocation3 [shape = 's32[1]{0}', space=sflag, size = 0x4, scoped, tag = 'scoped memory for tpu_custom_call.1']
    #allocation4 [shape = 's32[1]{0}', space=sflag, size = 0x4, scoped, tag = 'scoped memory for tpu_custom_call.1']
    #allocation5 [shape = 'u8[8192]{0}', space=vmem, size = 0x2000, scoped, tag = 'input window, operand 1, single buffered']
    #allocation6 [shape = 's32[1]{0}', space=sflag, size = 0x4, scoped, tag = 'scoped memory for tpu_custom_call.1']
    #allocation7 [shape = 'u8[8192]{0}', space=vmem, size = 0x2000, scoped, tag = 'output window, operand 0, single buffered']
    %7 = vsyncpa [#allocation3], 0
    %8 = vsyncpa [#allocation6], 0
    %9 = vsyncpa [#allocation4], 0
    // Predicated region
    $region2: #{tpu_custom_call.1} parent=1 // pred_check
      _
    $region3: #{tpu_custom_call.1} parent=1 // pred_check_branch
      %11 = sbr.rel (0) target = $region5
    $region4: #{tpu_custom_call.1} parent=1 // pred_region
      %13 = vsyncadd [#allocation3], 0
      %s15 = sshll.u32 %s0, 4
      %s16 = int_to_ptr.hbm [resolvable:$true] %s15
      %s17 = sshll.u32 [#allocation2], 4
      %s18 = int_to_ptr.vmem [resolvable:$true] %s17
      %20 = dma.hbm_to_vmem [thread:$0]  %s16, 256, %s18, [#allocation3]
    $region5: #{tpu_custom_call.1} parent=1 // pred_fallthru
      _
    // Predicated region
    $region6: #{tpu_custom_call.1} parent=1 // pred_check
      _
    $region7: #{tpu_custom_call.1} parent=1 // pred_check_branch
      %22 = sbr.rel (0) target = $region9
    $region8: #{tpu_custom_call.1} parent=1 // pred_region
      %24 = vsyncadd [#allocation6], 0
      %s26 = sshll.u32 %s1, 4
      %s27 = int_to_ptr.hbm [resolvable:$true] %s26
      %s28 = sshll.u32 [#allocation5], 4
      %s29 = int_to_ptr.vmem [resolvable:$true] %s28
      %31 = dma.hbm_to_vmem [thread:$0]  %s27, 256, %s29, [#allocation6]
    $region9: #{tpu_custom_call.1} parent=1 // pred_fallthru
      _
    // Predicated region
    $region10: #{tpu_custom_call.1} parent=1 // pred_check
      _
    $region11: #{tpu_custom_call.1} parent=1 // pred_check_branch
      %33 = sbr.rel (0) target = $region13
    $region12: #{tpu_custom_call.1} parent=1 // pred_region
      %35 = dma.done [#allocation3], 256
    $region13: #{tpu_custom_call.1} parent=1 // pred_fallthru
      _
    // Predicated region
    $region14: #{tpu_custom_call.1} parent=1 // pred_check
      _
    $region15: #{tpu_custom_call.1} parent=1 // pred_check_branch
      %37 = sbr.rel (0) target = $region17
    $region16: #{tpu_custom_call.1} parent=1 // pred_region
      %39 = dma.done [#allocation6], 256
    $region17: #{tpu_custom_call.1} parent=1 // pred_fallthru
      _
    %v40 = vld [vmem:[#allocation2] sm:$0xff]
    %v41 = vld [vmem:[#allocation2 + $0x8] sm:$0xff]
    %v42 = vld [vmem:[#allocation5] sm:$0xff]
    %v43 = vld [vmem:[#allocation5 + $0x8] sm:$0xff]
    %v44 = vand.u32 2147483647, %v40
    %v45 = vand.u32 2147483647, %v42
    %v46 = vrcp.pop %v45
    %v47 = vmul.f32 %v45, %v46
    %v48 = vsub.f32 1.0, %v47
    %v49 = vmul.f32 %v46, %v48
    %v50 = vadd.f32 %v46, %v49
    %vm51 = vweird.f32 %v45
    %vm52 = vweird.f32 %v46
    %vm53 = vmor %vm51, %vm52
    %v54 = vsel %vm53, %v46, %v50
    %v55 = vand.u32 2147483647, %v45
    %vm56 = vcmp.eq.f32.partialorder %v55, 8.507059e+37
    %v57 = vand.u32 %v45, 2147483648
    %v58 = vor.u32 1.1754944e-38, %v57
    %v59 = vsel %vm56, %v58, %v54
    %v60 = vmul.f32 %v44, %v59
    %v61 = vfloor.f32 %v60
    %v62 = vmul.f32 %v61, %v45
    %v63 = vsub.f32 %v44, %v62
    %vm64 = vcmp.eq.f32.partialorder %v63, %v45
    %v65 = vsel %vm64, 0.0, %v63
    %v66 = vand.u32 2147483647, %v65
    %v67 = vand.u32 %v40, 2147483648
    %v68 = vor.u32 %v66, %v67
    %v69 = vand.u32 2147483647, %v41
    %v70 = vand.u32 2147483647, %v43
    %v71 = vrcp.pop %v70
    %v72 = vmul.f32 %v70, %v71
    %v73 = vsub.f32 1.0, %v72
    %v74 = vmul.f32 %v71, %v73
    %v75 = vadd.f32 %v71, %v74
    %vm76 = vweird.f32 %v70
    %vm77 = vweird.f32 %v71
    %vm78 = vmor %vm76, %vm77
    %v79 = vsel %vm78, %v71, %v75
    %v80 = vand.u32 2147483647, %v70
    %vm81 = vcmp.eq.f32.partialorder %v80, 8.507059e+37
    %v82 = vand.u32 %v70, 2147483648
    %v83 = vor.u32 1.1754944e-38, %v82
    %v84 = vsel %vm81, %v83, %v79
    %v85 = vmul.f32 %v69, %v84
    %v86 = vfloor.f32 %v85
    %v87 = vmul.f32 %v86, %v70
    %v88 = vsub.f32 %v69, %v87
    %vm89 = vcmp.eq.f32.partialorder %v88, %v70
    %v90 = vsel %vm89, 0.0, %v88
    %v91 = vand.u32 2147483647, %v90
    %v92 = vand.u32 %v41, 2147483648
    %v93 = vor.u32 %v91, %v92
    %94 = vst [vmem:[#allocation7] sm:$0xff] %v68
    %95 = vst [vmem:[#allocation7 + $0x8] sm:$0xff] %v93
    // Predicated region
    $region18: #{tpu_custom_call.1} parent=1 // pred_check
      _
    $region19: #{tpu_custom_call.1} parent=1 // pred_check_branch
      %97 = sbr.rel (0) target = $region21
    $region20: #{tpu_custom_call.1} parent=1 // pred_region
      %99 = vsyncadd [#allocation4], 0
      %s101 = sshll.u32 [#allocation7], 4
      %s102 = int_to_ptr.vmem [resolvable:$true] %s101
      %s103 = sshll.u32 %s2, 4
      %s104 = int_to_ptr.hbm [resolvable:$true] %s103
      %106 = dma.vmem_to_hbm [thread:$0]  %s102, 256, %s104, [#allocation4]
    $region21: #{tpu_custom_call.1} parent=1 // pred_fallthru
      _
    // Predicated region
    $region22: #{tpu_custom_call.1} parent=1 // pred_check
      _
    $region23: #{tpu_custom_call.1} parent=1 // pred_check_branch
      %108 = sbr.rel (0) target = $region25
    $region24: #{tpu_custom_call.1} parent=1 // pred_region
      %110 = dma.done [#allocation4], 256
    $region25: #{tpu_custom_call.1} parent=1 // pred_fallthru
      _
    %111 = vsyncpa [#allocation3], 1
    %112 = vsyncpa [#allocation6], 1
    %113 = vsyncpa [#allocation4], 1

</llo_original>
